<compile_context>
chip_gen: v7x
topology: tpu7x:2x2x1
jax: 0.10.0
libtpu: 0.0.40
codegen_flags: <defaults>
</compile_context>

<pallas_src>
import functools

import jax
import jax.numpy as jnp
from jax.experimental import pallas as pl
from jax.experimental.pallas import tpu as pltpu

LANES = 128   # fused layer-1 width (64 critic + 64 actor) = one f32 vreg row
H1 = 64       # per-branch hidden-1 width
H2 = 32       # per-branch hidden-2 width


def fused_actor_critic_kernel(x_ref, w_ref, b_ref, out_ref, *, out_size):
    """Fused forward: 3 lane-dense bf16 MXU matmuls (f32 acc) + masked softmax.

    x_ref:   [B, 128]       input, lane `in_size` holds the constant 1 (bias-1)
    w_ref:   [3, 128, 128]  bf16 packed weights (b1 folded into w_ref[0])
    b_ref:   [2, 128]       f32 biases b2 | b3
    out_ref: [B, 128]       lane 0 = value, lanes 1..out_size = probs, rest 0
    """
    x = x_ref[...].astype(jnp.bfloat16)                      # [B,128] lane-dense

    # Layer 1: bias folded into the weight row at the constant-1 input lane.
    h = jnp.tanh(jnp.dot(x, w_ref[0], preferred_element_type=jnp.float32))
    # Layer 2 / 3: block-diagonal 128x128 keeps actor & critic independent.
    h = jnp.tanh(jnp.dot(h.astype(jnp.bfloat16), w_ref[1],
                         preferred_element_type=jnp.float32) + b_ref[0:1, :])
    z = jnp.dot(h.astype(jnp.bfloat16), w_ref[2],
                preferred_element_type=jnp.float32) + b_ref[1:2, :]

    # Numerically stable softmax over the logit lanes [1 .. out_size] only.
    col = jax.lax.broadcasted_iota(jnp.int32, z.shape, 1)
    is_logit = (col >= 1) & (col <= out_size)
    masked = jnp.where(is_logit, z, jnp.float32(-1e30))
    m = jnp.max(masked, axis=-1, keepdims=True)
    e = jnp.exp(masked - m)                                   # 0 on non-logit lanes
    denom = jnp.sum(e, axis=-1, keepdims=True)
    probs = e / denom                                         # exact: rows sum to 1

    # Single lane-dense, unmasked store: [ value | probs | zeros ].
    out_ref[...] = jnp.where(col == 0, z, probs).astype(out_ref.dtype)


def init_params(key, in_size, out_size):
    """Deterministic init mirroring nn.Linear shapes; weights stored as [in, out]."""
    def linear(key, fan_in, fan_out):
        kw, kb = jax.random.split(key)
        bound = 1.0 / jnp.sqrt(jnp.float32(fan_in))
        w = jax.random.uniform(kw, (fan_in, fan_out), jnp.float32, -bound, bound)
        b = jax.random.uniform(kb, (1, fan_out), jnp.float32, -bound, bound)
        return w, b

    keys = jax.random.split(key, 6)
    cw1, cb1 = linear(keys[0], in_size, H1)
    cw2, cb2 = linear(keys[1], H1, H2)
    cw3, cb3 = linear(keys[2], H2, 1)
    aw1, ab1 = linear(keys[3], in_size, H1)
    aw2, ab2 = linear(keys[4], H1, H2)
    aw3, ab3 = linear(keys[5], H2, out_size)
    return dict(
        cw1=cw1, cb1=cb1, cw2=cw2, cb2=cb2, cw3=cw3, cb3=cb3,
        aw1=aw1, ab1=ab1, aw2=aw2, ab2=ab2, aw3=aw3, ab3=ab3,
    )


def pack_params(p, in_size, out_size):
    """Pack 12 per-layer tensors into one bf16 [3,128,128] slab + [2,128] biases.

    * w[0]: [cw1|aw1] in rows 0..in_size-1; row `in_size` carries [cb1|ab1]
      (layer-1 bias folded via the constant-1 input lane).
    * w[1], w[2]: block-diagonal so the actor/critic branches stay independent;
      zero blocks are explicitly zero-initialized.
    """
    assert in_size + 1 <= LANES and 1 + out_size <= LANES

    w = jnp.zeros((3, LANES, LANES), jnp.float32)
    # W1 (+ folded b1)
    w = w.at[0, 0:in_size, 0:H1].set(p["cw1"])
    w = w.at[0, 0:in_size, H1:2 * H1].set(p["aw1"])
    w = w.at[0, in_size, 0:H1].set(p["cb1"][0])
    w = w.at[0, in_size, H1:2 * H1].set(p["ab1"][0])
    # W2: block-diagonal
    w = w.at[1, 0:H1, 0:H2].set(p["cw2"])
    w = w.at[1, H1:2 * H1, H2:2 * H2].set(p["aw2"])
    # W3: block-diagonal -> output lanes [value | logits | zeros]
    w = w.at[2, 0:H2, 0:1].set(p["cw3"])
    w = w.at[2, H2:2 * H2, 1:1 + out_size].set(p["aw3"])
    w = w.astype(jnp.bfloat16)                 # halves per-call weight DMA

    b = jnp.zeros((2, LANES), jnp.float32)     # biases stay f32 (tiny, 1 KB)
    b = b.at[0, 0:H2].set(p["cb2"][0])
    b = b.at[0, H2:2 * H2].set(p["ab2"][0])
    b = b.at[1, 0:1].set(p["cb3"][0])
    b = b.at[1, 1:1 + out_size].set(p["ab3"][0])

    return {"w": w, "b": b, "in_size": in_size, "out_size": out_size}


def pack_input(x, in_size):
    """Producer-side packing: [B, in_size] -> lane-dense [B, 128] with a
    constant-1 lane at column `in_size` (folds the layer-1 bias).  Ideally the
    producer emits this layout directly so the forward has zero wrapper ops."""
    B = x.shape[0]
    ones = jnp.ones((B, 1), x.dtype)
    zeros = jnp.zeros((B, LANES - in_size - 1), x.dtype)
    return jnp.concatenate([x, ones, zeros], axis=1)


def actor_critic_forward(x_packed, packed, *, batch_tile=256):
    """x_packed: [B, 128] f32 (see pack_input).  Returns (value [B,1], distrib [B,out])."""
    B = x_packed.shape[0]
    out_size = packed["out_size"]
    kernel = functools.partial(fused_actor_critic_kernel, out_size=out_size)
    out_shape = jax.ShapeDtypeStruct((B, LANES), jnp.float32)

    cost = pl.CostEstimate(
        flops=2 * B * LANES * (3 * LANES),                 # three [B,128]x[128,128]
        transcendentals=3 * B * LANES,                     # 2x tanh + 1x exp
        bytes_accessed=(x_packed.size * 4 + packed["w"].size * 2
                        + packed["b"].size * 4 + B * LANES * 4),
    )

    if B >= 2 * batch_tile and B % batch_tile == 0:
        # Large-B path: "parallel" batch grid -> v7x dual-TC split, 256-row MXU
        # M-tiles on v6e/v7x.  Constant index_maps keep weight/bias blocks
        # resident across grid steps (no re-DMA).
        slab = pl.pallas_call(
            kernel,
            out_shape=out_shape,
            grid=(B // batch_tile,),
            in_specs=[
                pl.BlockSpec((batch_tile, LANES), lambda i: (i, 0)),
                pl.BlockSpec((3, LANES, LANES), lambda i: (0, 0, 0)),
                pl.BlockSpec((2, LANES), lambda i: (0, 0)),
            ],
            out_specs=pl.BlockSpec((batch_tile, LANES), lambda i: (i, 0)),
            compiler_params=pltpu.CompilerParams(
                dimension_semantics=("parallel",)),
            cost_estimate=cost,
        )(x_packed, packed["w"], packed["b"])
    else:
        # Small-B path: gridless, launch/DMA-overhead dominated.
        vmem = pl.BlockSpec(memory_space=pltpu.MemorySpace.VMEM)
        slab = pl.pallas_call(
            kernel,
            out_shape=out_shape,
            in_specs=[vmem, vmem, vmem],
            out_specs=vmem,
            cost_estimate=cost,
        )(x_packed, packed["w"], packed["b"])

    # TODO(synk): downstream consumers (sampling / log-prob) could take the
    # [B,128] slab directly (or be fused into the kernel) to drop these slices.
    value = slab[:, 0:1]
    distrib = slab[:, 1:1 + out_size]
    return value, distrib


def reference_forward(x, p):
    """Pure-JAX f32 reference of the PyTorch forward (two NN instances)."""
    h = jnp.tanh(x @ p["cw1"] + p["cb1"])
    h = jnp.tanh(h @ p["cw2"] + p["cb2"])
    value = h @ p["cw3"] + p["cb3"]
    a = jnp.tanh(x @ p["aw1"] + p["ab1"])
    a = jnp.tanh(a @ p["aw2"] + p["ab2"])
    logits = a @ p["aw3"] + p["ab3"]
    distrib = jax.nn.softmax(logits, axis=-1)
    return value, distrib


if __name__ == "__main__":
    key = jax.random.PRNGKey(0)
    k_x, k_x2, k_p = jax.random.split(key, 3)

    B, IN_SIZE, OUT_SIZE = 8, 16, 4
    params = init_params(k_p, IN_SIZE, OUT_SIZE)
    packed = pack_params(params, IN_SIZE, OUT_SIZE)

    # --- small-batch (gridless) path -------------------------------------
    x = jax.random.normal(k_x, (B, IN_SIZE), jnp.float32)
    value, distrib = actor_critic_forward(pack_input(x, IN_SIZE), packed)
    jax.block_until_ready((value, distrib))

    v_ref, d_ref = reference_forward(x, params)
    assert value.shape == (B, 1) and distrib.shape == (B, OUT_SIZE)
    # bf16 weights/activations on the MXU -> relaxed tolerances vs f32 reference
    assert jnp.allclose(value, v_ref, atol=5e-2, rtol=5e-2)
    assert jnp.allclose(distrib, d_ref, atol=2e-2, rtol=2e-2)
    # exact softmax divide -> rows sum to 1 to f32 rounding
    assert jnp.allclose(jnp.sum(distrib, axis=-1), 1.0, atol=1e-3)

    # --- large-batch (parallel batch grid) path ---------------------------
    B2 = 512
    x2 = jax.random.normal(k_x2, (B2, IN_SIZE), jnp.float32)
    value2, distrib2 = actor_critic_forward(pack_input(x2, IN_SIZE), packed)
    jax.block_until_ready((value2, distrib2))

    v_ref2, d_ref2 = reference_forward(x2, params)
    assert value2.shape == (B2, 1) and distrib2.shape == (B2, OUT_SIZE)
    assert jnp.allclose(value2, v_ref2, atol=5e-2, rtol=5e-2)
    assert jnp.allclose(distrib2, d_ref2, atol=2e-2, rtol=2e-2)
    assert jnp.allclose(jnp.sum(distrib2, axis=-1), 1.0, atol=1e-3)

    print("KERNEL_OK")
</pallas_src>

<mosaic_0001>
module attributes {stable_mosaic.version = 11 : i64} {
  func.func @fused_actor_critic_kernel(%arg0: memref<8x128xf32, #tpu.memory_space<vmem>>, %arg1: memref<3x128x128xbf16, #tpu.memory_space<vmem>>, %arg2: memref<2x128xf32, #tpu.memory_space<vmem>>, %arg3: memref<8x128xf32, #tpu.memory_space<vmem>>) attributes {dimension_semantics = [], scalar_prefetch = 0 : i64, scratch_operands = 0 : i64, tpu.core_type = #tpu.core_type<tc>} {
    %c0 = arith.constant 0 : index
    %c0_0 = arith.constant 0 : index
    %0 = vector.load %arg0[%c0, %c0_0] : memref<8x128xf32, #tpu.memory_space<vmem>>, vector<8x128xf32>
    %1 = arith.truncf %0 : vector<8x128xf32> to vector<8x128xbf16>
    %c0_1 = arith.constant 0 : index
    %c0_2 = arith.constant 0 : index
    %c0_3 = arith.constant 0 : index
    %2 = vector.load %arg1[%c0_1, %c0_2, %c0_3] : memref<3x128x128xbf16, #tpu.memory_space<vmem>>, vector<1x128x128xbf16>
    %3 = vector.shape_cast %2 : vector<1x128x128xbf16> to vector<128x128xbf16>
    %cst = arith.constant dense<0.000000e+00> : vector<8x128xf32>
    %4 = tpu.matmul %1, %3, %cst {dimension_numbers = #tpu.dot_dimension_numbers<[1], [0], [0], [1], [0, 0, 1, 1], [], []>} : vector<8x128xbf16>, vector<128x128xbf16>, vector<8x128xf32> -> vector<8x128xf32>
    %5 = math.tanh %4 : vector<8x128xf32>
    %6 = arith.truncf %5 : vector<8x128xf32> to vector<8x128xbf16>
    %c1 = arith.constant 1 : index
    %c0_4 = arith.constant 0 : index
    %c0_5 = arith.constant 0 : index
    %7 = vector.load %arg1[%c1, %c0_4, %c0_5] : memref<3x128x128xbf16, #tpu.memory_space<vmem>>, vector<1x128x128xbf16>
    %8 = vector.shape_cast %7 : vector<1x128x128xbf16> to vector<128x128xbf16>
    %cst_6 = arith.constant dense<0.000000e+00> : vector<8x128xf32>
    %9 = tpu.matmul %6, %8, %cst_6 {dimension_numbers = #tpu.dot_dimension_numbers<[1], [0], [0], [1], [0, 0, 1, 1], [], []>} : vector<8x128xbf16>, vector<128x128xbf16>, vector<8x128xf32> -> vector<8x128xf32>
    %c0_7 = arith.constant 0 : index
    %c0_8 = arith.constant 0 : index
    %10 = vector.load %arg2[%c0_7, %c0_8] : memref<2x128xf32, #tpu.memory_space<vmem>>, vector<1x128xf32>
    %11 = vector.broadcast %10 : vector<1x128xf32> to vector<8x128xf32>
    %12 = arith.addf %9, %11 : vector<8x128xf32>
    %13 = math.tanh %12 : vector<8x128xf32>
    %14 = arith.truncf %13 : vector<8x128xf32> to vector<8x128xbf16>
    %c2 = arith.constant 2 : index
    %c0_9 = arith.constant 0 : index
    %c0_10 = arith.constant 0 : index
    %15 = vector.load %arg1[%c2, %c0_9, %c0_10] : memref<3x128x128xbf16, #tpu.memory_space<vmem>>, vector<1x128x128xbf16>
    %16 = vector.shape_cast %15 : vector<1x128x128xbf16> to vector<128x128xbf16>
    %cst_11 = arith.constant dense<0.000000e+00> : vector<8x128xf32>
    %17 = tpu.matmul %14, %16, %cst_11 {dimension_numbers = #tpu.dot_dimension_numbers<[1], [0], [0], [1], [0, 0, 1, 1], [], []>} : vector<8x128xbf16>, vector<128x128xbf16>, vector<8x128xf32> -> vector<8x128xf32>
    %c1_12 = arith.constant 1 : index
    %c0_13 = arith.constant 0 : index
    %18 = vector.load %arg2[%c1_12, %c0_13] : memref<2x128xf32, #tpu.memory_space<vmem>>, vector<1x128xf32>
    %19 = vector.broadcast %18 : vector<1x128xf32> to vector<8x128xf32>
    %20 = arith.addf %17, %19 : vector<8x128xf32>
    %21 = tpu.iota {dimensions = array<i32: 1>} : vector<8x128xi32>
    %c1_i32 = arith.constant 1 : i32
    %22 = vector.broadcast %c1_i32 : i32 to vector<8x128xi32>
    %23 = arith.cmpi sge, %21, %22 : vector<8x128xi32>
    %c4_i32 = arith.constant 4 : i32
    %24 = vector.broadcast %c4_i32 : i32 to vector<8x128xi32>
    %25 = arith.cmpi sle, %21, %24 : vector<8x128xi32>
    %26 = arith.andi %23, %25 : vector<8x128xi1>
    %cst_14 = arith.constant -1.000000e+30 : f32
    %27 = vector.broadcast %cst_14 : f32 to vector<8x128xf32>
    %28 = arith.select %26, %20, %27 : vector<8x128xi1>, vector<8x128xf32>
    %cst_15 = arith.constant dense<0xFF800000> : vector<8xf32>
    %29 = vector.multi_reduction <maximumf>, %28, %cst_15 [1] : vector<8x128xf32> to vector<8xf32>
    %30 = vector.shape_cast %29 : vector<8xf32> to vector<8x1xf32>
    %31 = vector.broadcast %30 : vector<8x1xf32> to vector<8x128xf32>
    %32 = arith.subf %28, %31 : vector<8x128xf32>
    %33 = math.exp %32 : vector<8x128xf32>
    %cst_16 = arith.constant dense<0.000000e+00> : vector<8xf32>
    %34 = vector.multi_reduction <add>, %33, %cst_16 [1] : vector<8x128xf32> to vector<8xf32>
    %35 = vector.shape_cast %34 : vector<8xf32> to vector<8x1xf32>
    %36 = vector.broadcast %35 : vector<8x1xf32> to vector<8x128xf32>
    %37 = arith.divf %33, %36 : vector<8x128xf32>
    %c0_i32 = arith.constant 0 : i32
    %38 = vector.broadcast %c0_i32 : i32 to vector<8x128xi32>
    %39 = arith.cmpi eq, %21, %38 : vector<8x128xi32>
    %40 = arith.select %39, %20, %37 : vector<8x128xi1>, vector<8x128xf32>
    %c0_17 = arith.constant 0 : index
    %c0_18 = arith.constant 0 : index
    %41 = vector.load %arg3[%c0_17, %c0_18] : memref<8x128xf32, #tpu.memory_space<vmem>>, vector<8x128xf32>
    tpu.vector_store %arg3[%c0_17, %c0_18], %40 {strides = array<i32>} : memref<8x128xf32, #tpu.memory_space<vmem>>, vector<8x128xf32>,
    return
  }
}

</mosaic_0001>

<llo_original>
// kernel: tpu_custom_call.1
$region0: #{tpu_custom_call.1}
  #allocation0 [shape = 'u32[]', space=smem, size = 0x4, offset = 0x4, fixed_abs, tag = 'smem constant byte address 0x4 - core index']
  #allocation1 [shape = 'u32[144,128]{1,0:T(1,128)}', space=vmem, size = 0x12000, scoped, tag = 'internal scratch']
  %s0 = inlined_call_operand.hbm [shape: f32[8,128], index: 0, kind: input, shape index: {}]
  %s1 = inlined_call_operand.hbm [shape: bf16[3,128,128], index: 1, kind: input, shape index: {}]
  %s2 = inlined_call_operand.vmem [shape: f32[2,128], index: 2, kind: input, shape index: {}]
  %s3 = inlined_call_operand.hbm [shape: f32[8,128], index: 3, kind: output, shape index: {}]
  %s4 = sld [smem:[#allocation0]]
  $region30: #{tpu_custom_call.1} parent=0
    _
  %s6 = ssub.s32 1, %s4
  %s7 = scalar_select 0, %s6, %s4
  $region1: #{tpu_custom_call.1} parent=0
    #allocation2 [shape = 'u8[4096]{0}', space=vmem, size = 0x1000, scoped, tag = 'input window, operand 0, single buffered']
    #allocation3 [shape = 's32[1]{0}', space=sflag, size = 0x4, scoped, tag = 'scoped memory for tpu_custom_call.1']
    #allocation4 [shape = 's32[1]{0}', space=sflag, size = 0x4, scoped, tag = 'scoped memory for tpu_custom_call.1']
    #allocation5 [shape = 'u8[98304]{0}', space=vmem, size = 0x18000, scoped, tag = 'input window, operand 1, single buffered']
    #allocation6 [shape = 's32[1]{0}', space=sflag, size = 0x4, scoped, tag = 'scoped memory for tpu_custom_call.1']
    #allocation7 [shape = 'u8[4096]{0}', space=vmem, size = 0x1000, scoped, tag = 'output window, operand 0, single buffered']
    %8 = vsyncpa [#allocation3], 0
    %9 = vsyncpa [#allocation6], 0
    %10 = vsyncpa [#allocation4], 0
    // Predicated region
    $region2: #{tpu_custom_call.1} parent=1 // pred_check
      _
    $region3: #{tpu_custom_call.1} parent=1 // pred_check_branch
      %12 = sbr.rel (0) target = $region5
    $region4: #{tpu_custom_call.1} parent=1 // pred_region
      %s14 = ssub.s32 128, 128
      %15 = vsyncadd [#allocation3], %s14
      %s17 = sshll.u32 [#allocation2], 4
      %s18 = int_to_ptr.vmem [resolvable:$true] %s17
      %20 = dma.hbm_to_vmem [thread:$0]  %s0, 128, %s18, [#allocation3]
    $region5: #{tpu_custom_call.1} parent=1 // pred_fallthru
      _
    // Predicated region
    $region6: #{tpu_custom_call.1} parent=1 // pred_check
      _
    $region7: #{tpu_custom_call.1} parent=1 // pred_check_branch
      %22 = sbr.rel (0) target = $region9
    $region8: #{tpu_custom_call.1} parent=1 // pred_region
      %s24 = ssub.s32 3072, 3072
      %25 = vsyncadd [#allocation6], %s24
      %s26 = sshll.u32 [#allocation5], 4
      %s27 = int_to_ptr.vmem [resolvable:$true] %s26
      %32 = dma.hbm_to_vmem [thread:$0]  %s1, 3072, %s27, [#allocation6], 64, 64, 4
    $region9: #{tpu_custom_call.1} parent=1 // pred_fallthru
      _
    // Predicated region
    $region10: #{tpu_custom_call.1} parent=1 // pred_check
      _
    $region11: #{tpu_custom_call.1} parent=1 // pred_check_branch
      %34 = sbr.rel (0) target = $region13
    $region12: #{tpu_custom_call.1} parent=1 // pred_region
      _
    $region13: #{tpu_custom_call.1} parent=1 // pred_fallthru
      _
    // Predicated region
    $region14: #{tpu_custom_call.1} parent=1 // pred_check
      _
    $region15: #{tpu_custom_call.1} parent=1 // pred_check_branch
      %36 = sbr.rel (0) target = $region17
    $region16: #{tpu_custom_call.1} parent=1 // pred_region
      %37 = dma.done [#allocation3], 128
    $region17: #{tpu_custom_call.1} parent=1 // pred_fallthru
      _
    // Predicated region
    $region18: #{tpu_custom_call.1} parent=1 // pred_check
      _
    $region19: #{tpu_custom_call.1} parent=1 // pred_check_branch
      %39 = sbr.rel (0) target = $region21
    $region20: #{tpu_custom_call.1} parent=1 // pred_region
      %40 = dma.done [#allocation6], 3072
    $region21: #{tpu_custom_call.1} parent=1 // pred_fallthru
      _
    %v42 = vld [vmem:[#allocation2] sm:$0xff]
    %v43 = vpack.c.bf16 %v42, %v42
    %v44 = vld [vmem:[#allocation5] sm:$0xf]
    %v45 = vld [vmem:[#allocation5 + $0x4] sm:$0xf]
    %v46 = vld [vmem:[#allocation5 + $0x8] sm:$0xf]
    %v47 = vld [vmem:[#allocation5 + $0xc] sm:$0xf]
    %v48 = vld [vmem:[#allocation5 + $0x10] sm:$0xf]
    %v49 = vld [vmem:[#allocation5 + $0x14] sm:$0xf]
    %v50 = vld [vmem:[#allocation5 + $0x18] sm:$0xf]
    %v51 = vld [vmem:[#allocation5 + $0x1c] sm:$0xf]
    %v52 = vld [vmem:[#allocation5 + $0x20] sm:$0xf]
    %v53 = vld [vmem:[#allocation5 + $0x24] sm:$0xf]
    %v54 = vld [vmem:[#allocation5 + $0x28] sm:$0xf]
    %v55 = vld [vmem:[#allocation5 + $0x2c] sm:$0xf]
    %v56 = vld [vmem:[#allocation5 + $0x30] sm:$0xf]
    %v57 = vld [vmem:[#allocation5 + $0x34] sm:$0xf]
    %v58 = vld [vmem:[#allocation5 + $0x38] sm:$0xf]
    %v59 = vld [vmem:[#allocation5 + $0x3c] sm:$0xf]
    %v76 = vunpack.c.l.b16 %v44
    %v77 = vunpack.c.l.b16 %v45
    %v78 = vunpack.c.l.b16 %v46
    %v79 = vunpack.c.l.b16 %v47
    %v80 = vunpack.c.l.b16 %v48
    %v81 = vunpack.c.l.b16 %v49
    %v82 = vunpack.c.l.b16 %v50
    %v83 = vunpack.c.l.b16 %v51
    %v84 = vunpack.c.l.b16 %v52
    %v85 = vunpack.c.l.b16 %v53
    %v86 = vunpack.c.l.b16 %v54
    %v87 = vunpack.c.l.b16 %v55
    %v88 = vunpack.c.l.b16 %v56
    %v89 = vunpack.c.l.b16 %v57
    %v90 = vunpack.c.l.b16 %v58
    %v91 = vunpack.c.l.b16 %v59
    %v92 = vpack.c.b16 %v77, %v76
    %v93 = vpack.c.b16 %v79, %v78
    %v94 = vpack.c.b16 %v81, %v80
    %v95 = vpack.c.b16 %v83, %v82
    %v96 = vpack.c.b16 %v85, %v84
    %v97 = vpack.c.b16 %v87, %v86
    %v98 = vpack.c.b16 %v89, %v88
    %v99 = vpack.c.b16 %v91, %v90
    %108 = vmatprep.subr.bf16.mxu0 0
    %109 = vmatpush1.bf16.msra.mxu0 %v92
    %110 = vmatprep.subr.bf16.mxu0 0
    %111 = vmatpush1.bf16.msra.mxu0 %v93
    %112 = vmatprep.subr.bf16.mxu0 0
    %113 = vmatpush1.bf16.msra.mxu0 %v94
    %114 = vmatprep.subr.bf16.mxu0 0
    %115 = vmatpush1.bf16.msra.mxu0 %v95
    %116 = vmatprep.subr.bf16.mxu0 0
    %117 = vmatpush1.bf16.msra.mxu0 %v96
    %118 = vmatprep.subr.bf16.mxu0 0
    %119 = vmatpush1.bf16.msra.mxu0 %v97
    %120 = vmatprep.subr.bf16.mxu0 0
    %121 = vmatpush1.bf16.msra.mxu0 %v98
    %122 = vmatprep.subr.bf16.mxu0 0
    %123 = vmatpush1.bf16.msra.mxu0 %v99
    %124 = vmatprep.subr.bf16.mxu0 0
    %125 = vmatpush1.bf16.msra.mxu0 0
    %126 = vmatprep.subr.bf16.mxu0 0
    %127 = vmatpush1.bf16.msra.mxu0 0
    %128 = vmatprep.subr.bf16.mxu0 0
    %129 = vmatpush1.bf16.msra.mxu0 0
    %130 = vmatprep.subr.bf16.mxu0 0
    %131 = vmatpush1.bf16.msra.mxu0 0
    %132 = vmatprep.subr.bf16.mxu0 0
    %133 = vmatpush1.bf16.msra.mxu0 0
    %134 = vmatprep.subr.bf16.mxu0 0
    %135 = vmatpush1.bf16.msra.mxu0 0
    %136 = vmatprep.subr.bf16.mxu0 0
    %137 = vmatpush1.bf16.msra.mxu0 0
    %138 = vmatprep.subr.bf16.mxu0 0
    %139 = vmatpush1.bf16.msra.mxu0 0
    %140 = vmatprep.mubr.bf16.mxu0 0
    %141 = vmatmul.mubr.bf16.gmra.mrb[0].mxu0 %v43
    %v142 = vpop.f32.mrb[0].mxu0
    %v143 = vadd.f32 0.0, %v142
    %v144 = vpop.f32.mrb[0].mxu0
    %v145 = vpop.f32.mrb[0].mxu0
    %v146 = vpop.f32.mrb[0].mxu0
    %147 = vdwg.mxu0
    %v148 = vtanh.pop %v143
    %v149 = vpack.c.bf16 %v148, %v148
    %s150 = scalar_lea.vmem [#allocation5], 64
    %v151 = vld [vmem:[%s150] sm:$0xf]
    %v152 = vld [vmem:[%s150 + $0x4] sm:$0xf]
    %v153 = vld [vmem:[%s150 + $0x8] sm:$0xf]
    %v154 = vld [vmem:[%s150 + $0xc] sm:$0xf]
    %v155 = vld [vmem:[%s150 + $0x10] sm:$0xf]
    %v156 = vld [vmem:[%s150 + $0x14] sm:$0xf]
    %v157 = vld [vmem:[%s150 + $0x18] sm:$0xf]
    %v158 = vld [vmem:[%s150 + $0x1c] sm:$0xf]
    %v159 = vld [vmem:[%s150 + $0x20] sm:$0xf]
    %v160 = vld [vmem:[%s150 + $0x24] sm:$0xf]
    %v161 = vld [vmem:[%s150 + $0x28] sm:$0xf]
    %v162 = vld [vmem:[%s150 + $0x2c] sm:$0xf]
    %v163 = vld [vmem:[%s150 + $0x30] sm:$0xf]
    %v164 = vld [vmem:[%s150 + $0x34] sm:$0xf]
    %v165 = vld [vmem:[%s150 + $0x38] sm:$0xf]
    %v166 = vld [vmem:[%s150 + $0x3c] sm:$0xf]
    %v167 = vld [vmem:[%s2] sm:$0x1]
    %v168 = vlaneseq
    %v169 = vshrl.u32 %v168, 7
    %v170 = vsub.s32 0, %v169
    %v171 = vrot.slane %v167, %v170
    %v188 = vunpack.c.l.b16 %v151
    %v189 = vunpack.c.l.b16 %v152
    %v190 = vunpack.c.l.b16 %v153
    %v191 = vunpack.c.l.b16 %v154
    %v192 = vunpack.c.l.b16 %v155
    %v193 = vunpack.c.l.b16 %v156
    %v194 = vunpack.c.l.b16 %v157
    %v195 = vunpack.c.l.b16 %v158
    %v196 = vunpack.c.l.b16 %v159
    %v197 = vunpack.c.l.b16 %v160
    %v198 = vunpack.c.l.b16 %v161
    %v199 = vunpack.c.l.b16 %v162
    %v200 = vunpack.c.l.b16 %v163
    %v201 = vunpack.c.l.b16 %v164
    %v202 = vunpack.c.l.b16 %v165
    %v203 = vunpack.c.l.b16 %v166
    %v204 = vpack.c.b16 %v189, %v188
    %v205 = vpack.c.b16 %v191, %v190
    %v206 = vpack.c.b16 %v193, %v192
    %v207 = vpack.c.b16 %v195, %v194
    %v208 = vpack.c.b16 %v197, %v196
    %v209 = vpack.c.b16 %v199, %v198
    %v210 = vpack.c.b16 %v201, %v200
    %v211 = vpack.c.b16 %v203, %v202
    %220 = vmatprep.subr.bf16.mxu0 0
    %221 = vmatpush1.bf16.msra.mxu0 %v204
    %222 = vmatprep.subr.bf16.mxu0 0
    %223 = vmatpush1.bf16.msra.mxu0 %v205
    %224 = vmatprep.subr.bf16.mxu0 0
    %225 = vmatpush1.bf16.msra.mxu0 %v206
    %226 = vmatprep.subr.bf16.mxu0 0
    %227 = vmatpush1.bf16.msra.mxu0 %v207
    %228 = vmatprep.subr.bf16.mxu0 0
    %229 = vmatpush1.bf16.msra.mxu0 %v208
    %230 = vmatprep.subr.bf16.mxu0 0
    %231 = vmatpush1.bf16.msra.mxu0 %v209
    %232 = vmatprep.subr.bf16.mxu0 0
    %233 = vmatpush1.bf16.msra.mxu0 %v210
    %234 = vmatprep.subr.bf16.mxu0 0
    %235 = vmatpush1.bf16.msra.mxu0 %v211
    %236 = vmatprep.subr.bf16.mxu0 0
    %237 = vmatpush1.bf16.msra.mxu0 0
    %238 = vmatprep.subr.bf16.mxu0 0
    %239 = vmatpush1.bf16.msra.mxu0 0
    %240 = vmatprep.subr.bf16.mxu0 0
    %241 = vmatpush1.bf16.msra.mxu0 0
    %242 = vmatprep.subr.bf16.mxu0 0
    %243 = vmatpush1.bf16.msra.mxu0 0
    %244 = vmatprep.subr.bf16.mxu0 0
    %245 = vmatpush1.bf16.msra.mxu0 0
    %246 = vmatprep.subr.bf16.mxu0 0
    %247 = vmatpush1.bf16.msra.mxu0 0
    %248 = vmatprep.subr.bf16.mxu0 0
    %249 = vmatpush1.bf16.msra.mxu0 0
    %250 = vmatprep.subr.bf16.mxu0 0
    %251 = vmatpush1.bf16.msra.mxu0 0
    %252 = vmatprep.mubr.bf16.mxu0 0
    %253 = vmatmul.mubr.bf16.gmra.mrb[0].mxu0 %v149
    %v254 = vpop.f32.mrb[0].mxu0
    %v255 = vadd.f32 %v171, %v254
    %v256 = vpop.f32.mrb[0].mxu0
    %v257 = vpop.f32.mrb[0].mxu0
    %v258 = vpop.f32.mrb[0].mxu0
    %259 = vdwg.mxu0
    %v260 = vtanh.pop %v255
    %v261 = vpack.c.bf16 %v260, %v260
    %s262 = scalar_lea.vmem [#allocation5], 128
    %v263 = vld [vmem:[%s262] sm:$0xf]
    %v264 = vld [vmem:[%s262 + $0x4] sm:$0xf]
    %v265 = vld [vmem:[%s262 + $0x8] sm:$0xf]
    %v266 = vld [vmem:[%s262 + $0xc] sm:$0xf]
    %v267 = vld [vmem:[%s262 + $0x10] sm:$0xf]
    %v268 = vld [vmem:[%s262 + $0x14] sm:$0xf]
    %v269 = vld [vmem:[%s262 + $0x18] sm:$0xf]
    %v270 = vld [vmem:[%s262 + $0x1c] sm:$0xf]
    %v271 = vld [vmem:[%s262 + $0x20] sm:$0xf]
    %v272 = vld [vmem:[%s262 + $0x24] sm:$0xf]
    %v273 = vld [vmem:[%s262 + $0x28] sm:$0xf]
    %v274 = vld [vmem:[%s262 + $0x2c] sm:$0xf]
    %v275 = vld [vmem:[%s262 + $0x30] sm:$0xf]
    %v276 = vld [vmem:[%s262 + $0x34] sm:$0xf]
    %v277 = vld [vmem:[%s262 + $0x38] sm:$0xf]
    %v278 = vld [vmem:[%s262 + $0x3c] sm:$0xf]
    %v279 = vld [vmem:[%s2 + $0x1] sm:$0x1]
    %v280 = vlaneseq
    %v281 = vshrl.u32 %v280, 7
    %v282 = vsub.s32 0, %v281
    %v283 = vrot.slane %v279, %v282
    %v300 = vunpack.c.l.b16 %v263
    %v301 = vunpack.c.l.b16 %v264
    %v302 = vunpack.c.l.b16 %v265
    %v303 = vunpack.c.l.b16 %v266
    %v304 = vunpack.c.l.b16 %v267
    %v305 = vunpack.c.l.b16 %v268
    %v306 = vunpack.c.l.b16 %v269
    %v307 = vunpack.c.l.b16 %v270
    %v308 = vunpack.c.l.b16 %v271
    %v309 = vunpack.c.l.b16 %v272
    %v310 = vunpack.c.l.b16 %v273
    %v311 = vunpack.c.l.b16 %v274
    %v312 = vunpack.c.l.b16 %v275
    %v313 = vunpack.c.l.b16 %v276
    %v314 = vunpack.c.l.b16 %v277
    %v315 = vunpack.c.l.b16 %v278
    %v316 = vpack.c.b16 %v301, %v300
    %v317 = vpack.c.b16 %v303, %v302
    %v318 = vpack.c.b16 %v305, %v304
    %v319 = vpack.c.b16 %v307, %v306
    %v320 = vpack.c.b16 %v309, %v308
    %v321 = vpack.c.b16 %v311, %v310
    %v322 = vpack.c.b16 %v313, %v312
    %v323 = vpack.c.b16 %v315, %v314
    %332 = vmatprep.subr.bf16.mxu0 0
    %333 = vmatpush1.bf16.msra.mxu0 %v316
    %334 = vmatprep.subr.bf16.mxu0 0
    %335 = vmatpush1.bf16.msra.mxu0 %v317
    %336 = vmatprep.subr.bf16.mxu0 0
    %337 = vmatpush1.bf16.msra.mxu0 %v318
    %338 = vmatprep.subr.bf16.mxu0 0
    %339 = vmatpush1.bf16.msra.mxu0 %v319
    %340 = vmatprep.subr.bf16.mxu0 0
    %341 = vmatpush1.bf16.msra.mxu0 %v320
    %342 = vmatprep.subr.bf16.mxu0 0
    %343 = vmatpush1.bf16.msra.mxu0 %v321
    %344 = vmatprep.subr.bf16.mxu0 0
    %345 = vmatpush1.bf16.msra.mxu0 %v322
    %346 = vmatprep.subr.bf16.mxu0 0
    %347 = vmatpush1.bf16.msra.mxu0 %v323
    %348 = vmatprep.subr.bf16.mxu0 0
    %349 = vmatpush1.bf16.msra.mxu0 0
    %350 = vmatprep.subr.bf16.mxu0 0
    %351 = vmatpush1.bf16.msra.mxu0 0
    %352 = vmatprep.subr.bf16.mxu0 0
    %353 = vmatpush1.bf16.msra.mxu0 0
    %354 = vmatprep.subr.bf16.mxu0 0
    %355 = vmatpush1.bf16.msra.mxu0 0
    %356 = vmatprep.subr.bf16.mxu0 0
    %357 = vmatpush1.bf16.msra.mxu0 0
    %358 = vmatprep.subr.bf16.mxu0 0
    %359 = vmatpush1.bf16.msra.mxu0 0
    %360 = vmatprep.subr.bf16.mxu0 0
    %361 = vmatpush1.bf16.msra.mxu0 0
    %362 = vmatprep.subr.bf16.mxu0 0
    %363 = vmatpush1.bf16.msra.mxu0 0
    %364 = vmatprep.mubr.bf16.mxu0 0
    %365 = vmatmul.mubr.bf16.gmra.mrb[0].mxu0 %v261
    %v366 = vpop.f32.mrb[0].mxu0
    %v367 = vadd.f32 %v283, %v366
    %v368 = vpop.f32.mrb[0].mxu0
    %v369 = vpop.f32.mrb[0].mxu0
    %v370 = vpop.f32.mrb[0].mxu0
    %371 = vdwg.mxu0
    %v372 = vlaneseq
    %v373 = vand.u32 %v372, 127
    %vm374 = vcmp.ge.s32.totalorder %v373, 1
    %vm375 = vcmp.le.s32.totalorder %v373, 4
    %vm376 = vmand %vm374, %vm375
    %v377 = vsel %vm376, %v367, -1e+30
    %378 = vmax.xlane.f32.xlu0 %v377
    %v379 = vpop.xlane.xlu0 %378
    %v380 = vsub.f32 %v377, %v379
    %v381 = vmul.f32 %v380, 1.442695
    %v382 = vpow.pop %v381
    %383 = vadd.xlane.f32.xlu0 %v382
    %v384 = vpop.xlane.xlu0 %383
    %v385 = vrcp.pop %v384
    %v386 = vmul.f32 %v382, %v385
    %vm387 = vcmp.eq.s32.totalorder %v373, 0
    %v388 = vsel %vm387, %v367, %v386
    %389 = vst [vmem:[#allocation7] sm:$0xff] %v388
    // Predicated region
    $region22: #{tpu_custom_call.1} parent=1 // pred_check
      _
    $region23: #{tpu_custom_call.1} parent=1 // pred_check_branch
      %391 = sbr.rel (0) target = $region25
    $region24: #{tpu_custom_call.1} parent=1 // pred_region
      %s393 = ssub.s32 128, 128
      %394 = vsyncadd [#allocation4], %s393
      %s396 = sshll.u32 [#allocation7], 4
      %s397 = int_to_ptr.vmem [resolvable:$true] %s396
      %399 = dma.vmem_to_hbm [thread:$0]  %s397, 128, %s3, [#allocation4]
    $region25: #{tpu_custom_call.1} parent=1 // pred_fallthru
      _
    // Predicated region
    $region26: #{tpu_custom_call.1} parent=1 // pred_check
      _
    $region27: #{tpu_custom_call.1} parent=1 // pred_check_branch
      %401 = sbr.rel (0) target = $region29
    $region28: #{tpu_custom_call.1} parent=1 // pred_region
      %402 = dma.done [#allocation4], 128
    $region29: #{tpu_custom_call.1} parent=1 // pred_fallthru
      _
    %403 = vsyncpa [#allocation3], 1
    %404 = vsyncpa [#allocation6], 1
    %405 = vsyncpa [#allocation4], 1

</llo_original>
